<compile_context>
chip_gen: v7x
topology: tpu7x:2x2x1
jax: 0.10.0
libtpu: 0.0.40
codegen_flags: <defaults>
</compile_context>

<pallas_src>
import math

import jax
import jax.numpy as jnp
from jax.experimental import pallas as pl
from jax.experimental.pallas import tpu as pltpu


# Per-tile byte budget.  Double-buffered input + output => ~4x this in VMEM
# (8 MiB), safe on every TPU generation (v5e scoped default is 16 MiB).
_TILE_BYTES = 2 * 1024 * 1024
_VMEM_LIMIT_BYTES = 32 * 1024 * 1024  # <= physical VMEM on v5e/v6e/v7x


def _num_tensorcores_per_chip():
    """Best-effort: v7x has 2 TensorCores/chip; keep >= 2 grid steps there."""
    try:
        kind = jax.devices()[0].device_kind.lower()
    except Exception:
        return 1
    return 2 if "v7" in kind else 1


_NUM_TC = _num_tensorcores_per_chip()


def _swap2d_kernel(x_ref, o_ref):
    # Batch dim squeezed out: x_ref is (tm, tn), o_ref is (tn, tm).
    # Clean 2-D sublane/lane transpose on the XLU.
    o_ref[...] = x_ref[...].T


def _swap_batched_kernel(x_ref, o_ref):
    # x_ref: (bb, M, N) -> o_ref: (bb, N, M).
    o_ref[...] = jnp.swapaxes(x_ref[...], 1, 2)


def _pick_tiles(M, N, itemsize):
    """Pick (tm, tn) for the squeezed tiled path.

    Any partial tile dim must be a multiple of 128: each of tm/tn is the lane
    dim of one of the two blocks and the sublane dim of the other.  Full-extent
    dims are always legal.
    """
    if M * N * itemsize <= _TILE_BYTES:
        return M, N
    tm = M if M <= 1024 else 1024          # 1024 is a multiple of 128
    tn_max = max(128, _TILE_BYTES // (tm * itemsize))
    if N <= tn_max:
        tn = N
    else:
        tn = max(128, (tn_max // 128) * 128)
    return tm, tn


def _transpose_last2(x3):
    """Transpose the last two dims of a 3-D array: (B, M, N) -> (B, N, M)."""
    B, M, N = x3.shape
    itemsize = x3.dtype.itemsize
    cost = pl.CostEstimate(flops=0, transcendentals=0,
                           bytes_accessed=2 * x3.size * itemsize)
    slab_bytes = M * N * itemsize

    if slab_bytes <= _TILE_BYTES and B > 1:
        # Whole (M, N) slab fits in one tile: block the batch axis instead to
        # amortize per-grid-step overhead over several images.
        bb = max(1, min(B, _TILE_BYTES // max(1, slab_bytes)))
        if _NUM_TC > 1:
            bb = min(bb, max(1, (B + 1) // 2))  # keep >= 2 steps for 2 TCs
        return pl.pallas_call(
            _swap_batched_kernel,
            out_shape=jax.ShapeDtypeStruct((B, N, M), x3.dtype),
            grid=(pl.cdiv(B, bb),),
            in_specs=[pl.BlockSpec((bb, M, N), lambda b: (b, 0, 0))],
            out_specs=pl.BlockSpec((bb, N, M), lambda b: (b, 0, 0)),
            compiler_params=pltpu.CompilerParams(
                dimension_semantics=("parallel",),
                vmem_limit_bytes=_VMEM_LIMIT_BYTES),
            cost_estimate=cost,
        )(x3)

    # Squeezed-batch tiled path.
    tm, tn = _pick_tiles(M, N, itemsize)
    if _NUM_TC > 1 and B == 1 and tm == M and tn == N:
        # Don't collapse the grid to one step on v7x (2 TensorCores).
        if M % 256 == 0 and M >= 256:
            tm = M // 2
        elif N % 256 == 0 and N >= 256:
            tn = N // 2
    grid = (B, pl.cdiv(M, tm), pl.cdiv(N, tn))
    return pl.pallas_call(
        _swap2d_kernel,
        out_shape=jax.ShapeDtypeStruct((B, N, M), x3.dtype),
        grid=grid,
        # Batch dim squeezed out of the kernel refs (None == pl.Squeezed()).
        # If an xprof trace shows input-DMA wait bubbles, sweep
        # pipeline_mode=pl.Buffered(3) on the input spec (costs one extra tile).
        in_specs=[pl.BlockSpec((None, tm, tn), lambda b, i, j: (b, i, j))],
        out_specs=pl.BlockSpec((None, tn, tm), lambda b, i, j: (b, j, i)),
        compiler_params=pltpu.CompilerParams(
            dimension_semantics=("parallel", "parallel", "parallel"),
            vmem_limit_bytes=_VMEM_LIMIT_BYTES),
        cost_estimate=cost,
    )(x3)


def transpose_pallas(x, dim0, dim1):
    """Pallas equivalent of torch.Tensor.transpose(dim0, dim1)."""
    ndim = x.ndim
    d0 = dim0 % ndim
    d1 = dim1 % ndim
    if d0 == d1:
        return x
    d0, d1 = (d0, d1) if d0 < d1 else (d1, d0)
    if d0 == ndim - 2 and d1 == ndim - 1:
        lead = x.shape[:d0]
        M, N = x.shape[d0], x.shape[d1]
        if M < 128:
            # Output last dim < 128 would force masked (lane-sparse) stores;
            # better handled by XLA's transpose.
            return jnp.swapaxes(x, d0, d1)
        batch = math.prod(lead) if lead else 1
        y3 = _transpose_last2(x.reshape(batch, M, N))
        return y3.reshape(*lead, N, M)
    # TODO(synk): swaps not involving the two minor dims need a block-permutation
    # kernel; fall back to XLA's transpose for those.
    return jnp.swapaxes(x, d0, d1)


class Transpose:
    """Mirror of the PyTorch nn.Module: forward(x) = x.transpose(dim0, dim1)."""

    def __init__(self, dim0, dim1):
        self.dim0 = dim0
        self.dim1 = dim1

    def __call__(self, x):
        return transpose_pallas(x, self.dim0, self.dim1)


if __name__ == "__main__":
    key = jax.random.PRNGKey(0)
    k1, k2, k3, k4 = jax.random.split(key, 4)

    t12 = Transpose(1, 2)

    # (batch, tokens, channels) as in DPT's Transpose(1, 2) usage; lane-dense,
    # exercises the batch-blocked Pallas path.
    x1 = jax.random.normal(k1, (2, 256, 128), jnp.float32)
    y1 = jax.block_until_ready(t12(x1))
    assert y1.shape == (2, 128, 256)
    assert bool(jnp.array_equal(y1, jnp.swapaxes(x1, 1, 2))), "batch-path mismatch"

    # Larger slab exceeding the per-tile budget -> tiled squeezed-batch path,
    # including a ragged boundary tile along N.
    x2 = jax.random.normal(k2, (2, 1024, 640), jnp.float32)
    y2 = jax.block_until_ready(t12(x2))
    assert bool(jnp.array_equal(y2, jnp.swapaxes(x2, 1, 2))), "tiled-path mismatch"

    # bf16 path (dtype-aware tile budget).
    x3 = jax.random.normal(k3, (2, 256, 256)).astype(jnp.bfloat16)
    y3 = jax.block_until_ready(t12(x3))
    assert bool(jnp.array_equal(y3, jnp.swapaxes(x3, 1, 2))), "bf16 mismatch"

    # Tiny second-minor dim (< 128 output lanes) -> guarded jnp fallback.
    x4 = jax.random.normal(k4, (2, 8, 32), jnp.float32)
    y4 = jax.block_until_ready(t12(x4))
    assert bool(jnp.array_equal(y4, jnp.swapaxes(x4, 1, 2))), "fallback mismatch"

    print("KERNEL_OK")
</pallas_src>

<mosaic_0001>
module attributes {stable_mosaic.version = 11 : i64} {
  func.func @_swap_batched_kernel(%arg0: i32, %arg1: memref<2x256x128xf32, #tpu.memory_space<vmem>>, %arg2: memref<2x128x256xf32, #tpu.memory_space<vmem>>) attributes {dimension_semantics = [#tpu.dimension_semantics<parallel>], iteration_bounds = array<i64: 1>, scalar_prefetch = 0 : i64, scratch_operands = 0 : i64, tpu.core_type = #tpu.core_type<tc>, window_params = [{transform_indices = @transform_0, window_bounds = array<i64: 2, 256, 128>}, {transform_indices = @transform_1, window_bounds = array<i64: 2, 128, 256>}]} {
    %c0 = arith.constant 0 : index
    %c0_0 = arith.constant 0 : index
    %c0_1 = arith.constant 0 : index
    %0 = vector.load %arg1[%c0, %c0_0, %c0_1] : memref<2x256x128xf32, #tpu.memory_space<vmem>>, vector<2x256x128xf32>
    %1 = tpu.transpose %0, [0, 2, 1] : vector<2x256x128xf32> -> vector<2x128x256xf32>
    %c0_2 = arith.constant 0 : index
    %c0_3 = arith.constant 0 : index
    %c0_4 = arith.constant 0 : index
    %2 = vector.load %arg2[%c0_2, %c0_3, %c0_4] : memref<2x128x256xf32, #tpu.memory_space<vmem>>, vector<2x128x256xf32>
    tpu.vector_store %arg2[%c0_2, %c0_3, %c0_4], %1 {strides = array<i32>} : memref<2x128x256xf32, #tpu.memory_space<vmem>>, vector<2x128x256xf32>,
    return
  }
  func.func @transform_0(%arg0: i32) -> (i32, i32, i32) {
    %c0_i32 = arith.constant 0 : i32
    %c0_i32_0 = arith.constant 0 : i32
    %c0_i32_1 = arith.constant 0 : i32
    return %arg0, %c0_i32, %c0_i32_0 : i32, i32, i32
  }
  func.func @transform_1(%arg0: i32) -> (i32, i32, i32) {
    %c0_i32 = arith.constant 0 : i32
    %c0_i32_0 = arith.constant 0 : i32
    %c0_i32_1 = arith.constant 0 : i32
    return %arg0, %c0_i32, %c0_i32_0 : i32, i32, i32
  }
}

</mosaic_0001>

<llo_original>
// kernel: tpu_custom_call.1
$region0: #{tpu_custom_call.1}
  #allocation0 [shape = 'u32[]', space=smem, size = 0x4, offset = 0x4, fixed_abs, tag = 'smem constant byte address 0x4 - core index']
  #allocation1 [shape = 'u32[144,128]{1,0:T(1,128)}', space=vmem, size = 0x12000, scoped, tag = 'internal scratch']
  %s0 = inlined_call_operand.hbm [shape: f32[2,256,128], index: 0, kind: input, shape index: {}]
  %s1 = inlined_call_operand.hbm [shape: f32[2,128,256], index: 1, kind: output, shape index: {}]
  %s2 = sld [smem:[#allocation0]]
  $region18: #{tpu_custom_call.1} parent=0
    _
  %s4 = ssub.s32 1, %s2
  %s5 = scalar_select 0, %s4, %s2
  $region1: #{tpu_custom_call.1} parent=0
    #allocation2 [shape = 'u8[262144]{0}', space=vmem, size = 0x40000, scoped, tag = 'input window, operand 0, single buffered']
    #allocation3 [shape = 's32[1]{0}', space=sflag, size = 0x4, scoped, tag = 'scoped memory for tpu_custom_call.1']
    #allocation4 [shape = 's32[1]{0}', space=sflag, size = 0x4, scoped, tag = 'scoped memory for tpu_custom_call.1']
    #allocation5 [shape = 'u8[262144]{0}', space=vmem, size = 0x40000, scoped, tag = 'output window, operand 0, single buffered']
    %6 = vsyncpa [#allocation3], 0
    %7 = vsyncpa [#allocation4], 0
    // Predicated region
    $region2: #{tpu_custom_call.1} parent=1 // pred_check
      _
    $region3: #{tpu_custom_call.1} parent=1 // pred_check_branch
      %9 = sbr.rel (0) target = $region5
    $region4: #{tpu_custom_call.1} parent=1 // pred_region
      %s11 = ssub.s32 8192, 8192
      %12 = vsyncadd [#allocation3], %s11
      %s13 = sshll.u32 [#allocation2], 4
      %s14 = int_to_ptr.vmem [resolvable:$true] %s13
      %19 = dma.hbm_to_vmem [thread:$0]  %s0, 8192, %s14, [#allocation3], 128, 128, 8
    $region5: #{tpu_custom_call.1} parent=1 // pred_fallthru
      _
    // Predicated region
    $region6: #{tpu_custom_call.1} parent=1 // pred_check
      _
    $region7: #{tpu_custom_call.1} parent=1 // pred_check_branch
      %21 = sbr.rel (0) target = $region9
    $region8: #{tpu_custom_call.1} parent=1 // pred_region
      %22 = dma.done [#allocation3], 8192
    $region9: #{tpu_custom_call.1} parent=1 // pred_fallthru
      _
    %v23 = vld [vmem:[#allocation2] sm:$0xff]
    %v24 = vld [vmem:[#allocation2 + $0x8] sm:$0xff]
    %v25 = vld [vmem:[#allocation2 + $0x10] sm:$0xff]
    %v26 = vld [vmem:[#allocation2 + $0x18] sm:$0xff]
    %v27 = vld [vmem:[#allocation2 + $0x20] sm:$0xff]
    %v28 = vld [vmem:[#allocation2 + $0x28] sm:$0xff]
    %v29 = vld [vmem:[#allocation2 + $0x30] sm:$0xff]
    %v30 = vld [vmem:[#allocation2 + $0x38] sm:$0xff]
    %v31 = vld [vmem:[#allocation2 + $0x40] sm:$0xff]
    %v32 = vld [vmem:[#allocation2 + $0x48] sm:$0xff]
    %v33 = vld [vmem:[#allocation2 + $0x50] sm:$0xff]
    %v34 = vld [vmem:[#allocation2 + $0x58] sm:$0xff]
    %v35 = vld [vmem:[#allocation2 + $0x60] sm:$0xff]
    %v36 = vld [vmem:[#allocation2 + $0x68] sm:$0xff]
    %v37 = vld [vmem:[#allocation2 + $0x70] sm:$0xff]
    %v38 = vld [vmem:[#allocation2 + $0x78] sm:$0xff]
    %v39 = vld [vmem:[#allocation2 + $0x80] sm:$0xff]
    %v40 = vld [vmem:[#allocation2 + $0x88] sm:$0xff]
    %v41 = vld [vmem:[#allocation2 + $0x90] sm:$0xff]
    %v42 = vld [vmem:[#allocation2 + $0x98] sm:$0xff]
    %v43 = vld [vmem:[#allocation2 + $0xa0] sm:$0xff]
    %v44 = vld [vmem:[#allocation2 + $0xa8] sm:$0xff]
    %v45 = vld [vmem:[#allocation2 + $0xb0] sm:$0xff]
    %v46 = vld [vmem:[#allocation2 + $0xb8] sm:$0xff]
    %v47 = vld [vmem:[#allocation2 + $0xc0] sm:$0xff]
    %v48 = vld [vmem:[#allocation2 + $0xc8] sm:$0xff]
    %v49 = vld [vmem:[#allocation2 + $0xd0] sm:$0xff]
    %v50 = vld [vmem:[#allocation2 + $0xd8] sm:$0xff]
    %v51 = vld [vmem:[#allocation2 + $0xe0] sm:$0xff]
    %v52 = vld [vmem:[#allocation2 + $0xe8] sm:$0xff]
    %v53 = vld [vmem:[#allocation2 + $0xf0] sm:$0xff]
    %v54 = vld [vmem:[#allocation2 + $0xf8] sm:$0xff]
    %v55 = vld [vmem:[#allocation2 + $0x100] sm:$0xff]
    %v56 = vld [vmem:[#allocation2 + $0x108] sm:$0xff]
    %v57 = vld [vmem:[#allocation2 + $0x110] sm:$0xff]
    %v58 = vld [vmem:[#allocation2 + $0x118] sm:$0xff]
    %v59 = vld [vmem:[#allocation2 + $0x120] sm:$0xff]
    %v60 = vld [vmem:[#allocation2 + $0x128] sm:$0xff]
    %v61 = vld [vmem:[#allocation2 + $0x130] sm:$0xff]
    %v62 = vld [vmem:[#allocation2 + $0x138] sm:$0xff]
    %v63 = vld [vmem:[#allocation2 + $0x140] sm:$0xff]
    %v64 = vld [vmem:[#allocation2 + $0x148] sm:$0xff]
    %v65 = vld [vmem:[#allocation2 + $0x150] sm:$0xff]
    %v66 = vld [vmem:[#allocation2 + $0x158] sm:$0xff]
    %v67 = vld [vmem:[#allocation2 + $0x160] sm:$0xff]
    %v68 = vld [vmem:[#allocation2 + $0x168] sm:$0xff]
    %v69 = vld [vmem:[#allocation2 + $0x170] sm:$0xff]
    %v70 = vld [vmem:[#allocation2 + $0x178] sm:$0xff]
    %v71 = vld [vmem:[#allocation2 + $0x180] sm:$0xff]
    %v72 = vld [vmem:[#allocation2 + $0x188] sm:$0xff]
    %v73 = vld [vmem:[#allocation2 + $0x190] sm:$0xff]
    %v74 = vld [vmem:[#allocation2 + $0x198] sm:$0xff]
    %v75 = vld [vmem:[#allocation2 + $0x1a0] sm:$0xff]
    %v76 = vld [vmem:[#allocation2 + $0x1a8] sm:$0xff]
    %v77 = vld [vmem:[#allocation2 + $0x1b0] sm:$0xff]
    %v78 = vld [vmem:[#allocation2 + $0x1b8] sm:$0xff]
    %v79 = vld [vmem:[#allocation2 + $0x1c0] sm:$0xff]
    %v80 = vld [vmem:[#allocation2 + $0x1c8] sm:$0xff]
    %v81 = vld [vmem:[#allocation2 + $0x1d0] sm:$0xff]
    %v82 = vld [vmem:[#allocation2 + $0x1d8] sm:$0xff]
    %v83 = vld [vmem:[#allocation2 + $0x1e0] sm:$0xff]
    %v84 = vld [vmem:[#allocation2 + $0x1e8] sm:$0xff]
    %v85 = vld [vmem:[#allocation2 + $0x1f0] sm:$0xff]
    %v86 = vld [vmem:[#allocation2 + $0x1f8] sm:$0xff]
    %87 = vxpose.xlu0.b32.start [1/16] %v23, 128
    %88 = vxpose.xlu0.b32.cont [2/16] %v24, 128
    %89 = vxpose.xlu0.b32.cont [3/16] %v25, 128
    %90 = vxpose.xlu0.b32.cont [4/16] %v26, 128
    %91 = vxpose.xlu0.b32.cont [5/16] %v27, 128
    %92 = vxpose.xlu0.b32.cont [6/16] %v28, 128
    %93 = vxpose.xlu0.b32.cont [7/16] %v29, 128
    %94 = vxpose.xlu0.b32.cont [8/16] %v30, 128
    %95 = vxpose.xlu0.b32.cont [9/16] %v31, 128
    %96 = vxpose.xlu0.b32.cont [10/16] %v32, 128
    %97 = vxpose.xlu0.b32.cont [11/16] %v33, 128
    %98 = vxpose.xlu0.b32.cont [12/16] %v34, 128
    %99 = vxpose.xlu0.b32.cont [13/16] %v35, 128
    %100 = vxpose.xlu0.b32.cont [14/16] %v36, 128
    %101 = vxpose.xlu0.b32.cont [15/16] %v37, 128
    %102 = vxpose.xlu0.b32.end [16/16] %v38, 128
    %v103 = vpop.trf.xlu0
    %v104 = vpop.trf.xlu0
    %v105 = vpop.trf.xlu0
    %v106 = vpop.trf.xlu0
    %v107 = vpop.trf.xlu0
    %v108 = vpop.trf.xlu0
    %v109 = vpop.trf.xlu0
    %v110 = vpop.trf.xlu0
    %v111 = vpop.trf.xlu0
    %v112 = vpop.trf.xlu0
    %v113 = vpop.trf.xlu0
    %v114 = vpop.trf.xlu0
    %v115 = vpop.trf.xlu0
    %v116 = vpop.trf.xlu0
    %v117 = vpop.trf.xlu0
    %v118 = vpop.trf.xlu0
    %119 = vxpose.xlu0.b32.start [1/16] %v39, 128
    %120 = vxpose.xlu0.b32.cont [2/16] %v40, 128
    %121 = vxpose.xlu0.b32.cont [3/16] %v41, 128
    %122 = vxpose.xlu0.b32.cont [4/16] %v42, 128
    %123 = vxpose.xlu0.b32.cont [5/16] %v43, 128
    %124 = vxpose.xlu0.b32.cont [6/16] %v44, 128
    %125 = vxpose.xlu0.b32.cont [7/16] %v45, 128
    %126 = vxpose.xlu0.b32.cont [8/16] %v46, 128
    %127 = vxpose.xlu0.b32.cont [9/16] %v47, 128
    %128 = vxpose.xlu0.b32.cont [10/16] %v48, 128
    %129 = vxpose.xlu0.b32.cont [11/16] %v49, 128
    %130 = vxpose.xlu0.b32.cont [12/16] %v50, 128
    %131 = vxpose.xlu0.b32.cont [13/16] %v51, 128
    %132 = vxpose.xlu0.b32.cont [14/16] %v52, 128
    %133 = vxpose.xlu0.b32.cont [15/16] %v53, 128
    %134 = vxpose.xlu0.b32.end [16/16] %v54, 128
    %v135 = vpop.trf.xlu0
    %v136 = vpop.trf.xlu0
    %v137 = vpop.trf.xlu0
    %v138 = vpop.trf.xlu0
    %v139 = vpop.trf.xlu0
    %v140 = vpop.trf.xlu0
    %v141 = vpop.trf.xlu0
    %v142 = vpop.trf.xlu0
    %v143 = vpop.trf.xlu0
    %v144 = vpop.trf.xlu0
    %v145 = vpop.trf.xlu0
    %v146 = vpop.trf.xlu0
    %v147 = vpop.trf.xlu0
    %v148 = vpop.trf.xlu0
    %v149 = vpop.trf.xlu0
    %v150 = vpop.trf.xlu0
    %151 = vxpose.xlu0.b32.start [1/16] %v55, 128
    %152 = vxpose.xlu0.b32.cont [2/16] %v56, 128
    %153 = vxpose.xlu0.b32.cont [3/16] %v57, 128
    %154 = vxpose.xlu0.b32.cont [4/16] %v58, 128
    %155 = vxpose.xlu0.b32.cont [5/16] %v59, 128
    %156 = vxpose.xlu0.b32.cont [6/16] %v60, 128
    %157 = vxpose.xlu0.b32.cont [7/16] %v61, 128
    %158 = vxpose.xlu0.b32.cont [8/16] %v62, 128
    %159 = vxpose.xlu0.b32.cont [9/16] %v63, 128
    %160 = vxpose.xlu0.b32.cont [10/16] %v64, 128
    %161 = vxpose.xlu0.b32.cont [11/16] %v65, 128
    %162 = vxpose.xlu0.b32.cont [12/16] %v66, 128
    %163 = vxpose.xlu0.b32.cont [13/16] %v67, 128
    %164 = vxpose.xlu0.b32.cont [14/16] %v68, 128
    %165 = vxpose.xlu0.b32.cont [15/16] %v69, 128
    %166 = vxpose.xlu0.b32.end [16/16] %v70, 128
    %v167 = vpop.trf.xlu0
    %v168 = vpop.trf.xlu0
    %v169 = vpop.trf.xlu0
    %v170 = vpop.trf.xlu0
    %v171 = vpop.trf.xlu0
    %v172 = vpop.trf.xlu0
    %v173 = vpop.trf.xlu0
    %v174 = vpop.trf.xlu0
    %v175 = vpop.trf.xlu0
    %v176 = vpop.trf.xlu0
    %v177 = vpop.trf.xlu0
    %v178 = vpop.trf.xlu0
    %v179 = vpop.trf.xlu0
    %v180 = vpop.trf.xlu0
    %v181 = vpop.trf.xlu0
    %v182 = vpop.trf.xlu0
    %183 = vxpose.xlu0.b32.start [1/16] %v71, 128
    %184 = vxpose.xlu0.b32.cont [2/16] %v72, 128
    %185 = vxpose.xlu0.b32.cont [3/16] %v73, 128
    %186 = vxpose.xlu0.b32.cont [4/16] %v74, 128
    %187 = vxpose.xlu0.b32.cont [5/16] %v75, 128
    %188 = vxpose.xlu0.b32.cont [6/16] %v76, 128
    %189 = vxpose.xlu0.b32.cont [7/16] %v77, 128
    %190 = vxpose.xlu0.b32.cont [8/16] %v78, 128
    %191 = vxpose.xlu0.b32.cont [9/16] %v79, 128
    %192 = vxpose.xlu0.b32.cont [10/16] %v80, 128
    %193 = vxpose.xlu0.b32.cont [11/16] %v81, 128
    %194 = vxpose.xlu0.b32.cont [12/16] %v82, 128
    %195 = vxpose.xlu0.b32.cont [13/16] %v83, 128
    %196 = vxpose.xlu0.b32.cont [14/16] %v84, 128
    %197 = vxpose.xlu0.b32.cont [15/16] %v85, 128
    %198 = vxpose.xlu0.b32.end [16/16] %v86, 128
    %v199 = vpop.trf.xlu0
    %v200 = vpop.trf.xlu0
    %v201 = vpop.trf.xlu0
    %v202 = vpop.trf.xlu0
    %v203 = vpop.trf.xlu0
    %v204 = vpop.trf.xlu0
    %v205 = vpop.trf.xlu0
    %v206 = vpop.trf.xlu0
    %v207 = vpop.trf.xlu0
    %v208 = vpop.trf.xlu0
    %v209 = vpop.trf.xlu0
    %v210 = vpop.trf.xlu0
    %v211 = vpop.trf.xlu0
    %v212 = vpop.trf.xlu0
    %v213 = vpop.trf.xlu0
    %v214 = vpop.trf.xlu0
    %215 = vst [vmem:[#allocation5] sm:$0xff] %v103
    %216 = vst [vmem:[#allocation5 + $0x8] sm:$0xff] %v135
    %217 = vst [vmem:[#allocation5 + $0x10] sm:$0xff] %v104
    %218 = vst [vmem:[#allocation5 + $0x18] sm:$0xff] %v136
    %219 = vst [vmem:[#allocation5 + $0x20] sm:$0xff] %v105
    %220 = vst [vmem:[#allocation5 + $0x28] sm:$0xff] %v137
    %221 = vst [vmem:[#allocation5 + $0x30] sm:$0xff] %v106
    %222 = vst [vmem:[#allocation5 + $0x38] sm:$0xff] %v138
    %223 = vst [vmem:[#allocation5 + $0x40] sm:$0xff] %v107
    %224 = vst [vmem:[#allocation5 + $0x48] sm:$0xff] %v139
    %225 = vst [vmem:[#allocation5 + $0x50] sm:$0xff] %v108
    %226 = vst [vmem:[#allocation5 + $0x58] sm:$0xff] %v140
    %227 = vst [vmem:[#allocation5 + $0x60] sm:$0xff] %v109
    %228 = vst [vmem:[#allocation5 + $0x68] sm:$0xff] %v141
    %229 = vst [vmem:[#allocation5 + $0x70] sm:$0xff] %v110
    %230 = vst [vmem:[#allocation5 + $0x78] sm:$0xff] %v142
    %231 = vst [vmem:[#allocation5 + $0x80] sm:$0xff] %v111
    %232 = vst [vmem:[#allocation5 + $0x88] sm:$0xff] %v143
    %233 = vst [vmem:[#allocation5 + $0x90] sm:$0xff] %v112
    %234 = vst [vmem:[#allocation5 + $0x98] sm:$0xff] %v144
    %235 = vst [vmem:[#allocation5 + $0xa0] sm:$0xff] %v113
    %236 = vst [vmem:[#allocation5 + $0xa8] sm:$0xff] %v145
    %237 = vst [vmem:[#allocation5 + $0xb0] sm:$0xff] %v114
    %238 = vst [vmem:[#allocation5 + $0xb8] sm:$0xff] %v146
    %239 = vst [vmem:[#allocation5 + $0xc0] sm:$0xff] %v115
    %240 = vst [vmem:[#allocation5 + $0xc8] sm:$0xff] %v147
    %241 = vst [vmem:[#allocation5 + $0xd0] sm:$0xff] %v116
    %242 = vst [vmem:[#allocation5 + $0xd8] sm:$0xff] %v148
    %243 = vst [vmem:[#allocation5 + $0xe0] sm:$0xff] %v117
    %244 = vst [vmem:[#allocation5 + $0xe8] sm:$0xff] %v149
    %245 = vst [vmem:[#allocation5 + $0xf0] sm:$0xff] %v118
    %246 = vst [vmem:[#allocation5 + $0xf8] sm:$0xff] %v150
    %247 = vst [vmem:[#allocation5 + $0x100] sm:$0xff] %v167
    %248 = vst [vmem:[#allocation5 + $0x108] sm:$0xff] %v199
    %249 = vst [vmem:[#allocation5 + $0x110] sm:$0xff] %v168
    %250 = vst [vmem:[#allocation5 + $0x118] sm:$0xff] %v200
    %251 = vst [vmem:[#allocation5 + $0x120] sm:$0xff] %v169
    %252 = vst [vmem:[#allocation5 + $0x128] sm:$0xff] %v201
    %253 = vst [vmem:[#allocation5 + $0x130] sm:$0xff] %v170
    %254 = vst [vmem:[#allocation5 + $0x138] sm:$0xff] %v202
    %255 = vst [vmem:[#allocation5 + $0x140] sm:$0xff] %v171
    %256 = vst [vmem:[#allocation5 + $0x148] sm:$0xff] %v203
    %257 = vst [vmem:[#allocation5 + $0x150] sm:$0xff] %v172
    %258 = vst [vmem:[#allocation5 + $0x158] sm:$0xff] %v204
    %259 = vst [vmem:[#allocation5 + $0x160] sm:$0xff] %v173
    %260 = vst [vmem:[#allocation5 + $0x168] sm:$0xff] %v205
    %261 = vst [vmem:[#allocation5 + $0x170] sm:$0xff] %v174
    %262 = vst [vmem:[#allocation5 + $0x178] sm:$0xff] %v206
    %263 = vst [vmem:[#allocation5 + $0x180] sm:$0xff] %v175
    %264 = vst [vmem:[#allocation5 + $0x188] sm:$0xff] %v207
    %265 = vst [vmem:[#allocation5 + $0x190] sm:$0xff] %v176
    %266 = vst [vmem:[#allocation5 + $0x198] sm:$0xff] %v208
    %267 = vst [vmem:[#allocation5 + $0x1a0] sm:$0xff] %v177
    %268 = vst [vmem:[#allocation5 + $0x1a8] sm:$0xff] %v209
    %269 = vst [vmem:[#allocation5 + $0x1b0] sm:$0xff] %v178
    %270 = vst [vmem:[#allocation5 + $0x1b8] sm:$0xff] %v210
    %271 = vst [vmem:[#allocation5 + $0x1c0] sm:$0xff] %v179
    %272 = vst [vmem:[#allocation5 + $0x1c8] sm:$0xff] %v211
    %273 = vst [vmem:[#allocation5 + $0x1d0] sm:$0xff] %v180
    %274 = vst [vmem:[#allocation5 + $0x1d8] sm:$0xff] %v212
    %275 = vst [vmem:[#allocation5 + $0x1e0] sm:$0xff] %v181
    %276 = vst [vmem:[#allocation5 + $0x1e8] sm:$0xff] %v213
    %277 = vst [vmem:[#allocation5 + $0x1f0] sm:$0xff] %v182
    %278 = vst [vmem:[#allocation5 + $0x1f8] sm:$0xff] %v214
    // Predicated region
    $region10: #{tpu_custom_call.1} parent=1 // pred_check
      _
    $region11: #{tpu_custom_call.1} parent=1 // pred_check_branch
      %280 = sbr.rel (0) target = $region13
    $region12: #{tpu_custom_call.1} parent=1 // pred_region
      %s282 = ssub.s32 8192, 8192
      %283 = vsyncadd [#allocation4], %s282
      %s284 = sshll.u32 [#allocation5], 4
      %s285 = int_to_ptr.vmem [resolvable:$true] %s284
      %290 = dma.vmem_to_hbm [thread:$0]  %s285, 8192, %s1, [#allocation4], 256, 256, 16
    $region13: #{tpu_custom_call.1} parent=1 // pred_fallthru
      _
    // Predicated region
    $region14: #{tpu_custom_call.1} parent=1 // pred_check
      _
    $region15: #{tpu_custom_call.1} parent=1 // pred_check_branch
      %292 = sbr.rel (0) target = $region17
    $region16: #{tpu_custom_call.1} parent=1 // pred_region
      %293 = dma.done [#allocation4], 8192
    $region17: #{tpu_custom_call.1} parent=1 // pred_fallthru
      _
    %294 = vsyncpa [#allocation3], 1
    %295 = vsyncpa [#allocation4], 1

</llo_original>
